<compile_context>
chip_gen: v5e
topology: v5e:2x2
jax: 0.10.0
libtpu: 0.0.40
codegen_flags: <defaults>
</compile_context>

<pallas_src>
from typing import NamedTuple

import jax
import jax.numpy as jnp
import numpy as np
from jax.experimental import pallas as pl
from jax.experimental.pallas import tpu as pltpu


# ---------------------------------------------------------------------------
# Small helpers
# ---------------------------------------------------------------------------
def _round_up(n, m):
    return ((n + m - 1) // m) * m


def _nbytes(shape, dtype):
    return int(np.prod(shape)) * np.dtype(dtype).itemsize


def _vmem_limit(block_bytes, scratch_bytes=0):
    """Scoped-VMEM budget: 2 buffers per BlockSpec'd operand + scratch +
    headroom, capped just under the device's physical VMEM."""
    need = 2 * int(sum(block_bytes)) + int(scratch_bytes) + (2 << 20)
    try:
        cap = int(pltpu.get_tpu_info().vmem_capacity_bytes)
    except Exception:                      # conservative default (v7x: 64 MiB)
        cap = 64 << 20
    return int(max(min(need, cap - (1 << 20)), 16 << 20))


class LSTMParams(NamedTuple):
    w_cat: jax.Array    # (D, 4*Hp)  gate order [i, f, o, c], Hp-padded per gate
    u_cat: jax.Array    # (Hp, 4*Hp)
    b_cat: jax.Array    # (1, 4*Hp)  f32
    hidden_size: int    # true (un-padded) H


def pack_lstm_params(W1, W2, W3, W4, U1, U2, U3, U4,
                     bias_i, bias_f, bias_o, bias_c,
                     *, compute_dtype=jnp.bfloat16):
    """Pack the torch parameters into lane-dense concatenated matrices.

    Gate order [i, f, o, c] matches the module: (W1,U1,bias_i)=i,
    (W2,U2,bias_f)=f, (W3,U3,bias_o)=o, (W4,U4,bias_c)=c_tilda.  Each gate's
    H columns (and the H rows of U) are zero-padded to Hp = round_up(H, 128)
    so every gate slice / store in the kernels is 128-lane aligned; the zero
    padding keeps padded h/c columns exactly 0 through the recurrence.
    """
    _, H = W1.shape
    Hp = _round_up(H, 128)
    pc = Hp - H
    pW = lambda w: jnp.pad(w, ((0, 0), (0, pc)))
    pU = lambda u: jnp.pad(u, ((0, pc), (0, pc)))
    pB = lambda b: jnp.pad(b, ((0, 0), (0, pc)))
    w_cat = jnp.concatenate([pW(W1), pW(W2), pW(W3), pW(W4)],
                            axis=1).astype(compute_dtype)            # (D, 4Hp)
    u_cat = jnp.concatenate([pU(U1), pU(U2), pU(U3), pU(U4)],
                            axis=1).astype(compute_dtype)            # (Hp, 4Hp)
    b_cat = jnp.concatenate([pB(bias_i), pB(bias_f), pB(bias_o), pB(bias_c)],
                            axis=1).astype(jnp.float32)              # (1, 4Hp)
    return LSTMParams(w_cat, u_cat, b_cat, H)


# ---------------------------------------------------------------------------
# Shared gate math (f32 element-wise), slab order [i, f, o, c]
# ---------------------------------------------------------------------------
def _gate_math(pre, c, Hp):
    """pre: (B, 4Hp) f32 pre-activation slab, c: (B, Hp) f32."""
    ifo = jax.nn.sigmoid(pre[:, :3 * Hp])        # fused i/f/o sigmoid
    i_g = ifo[:, 0 * Hp:1 * Hp]
    f_g = ifo[:, 1 * Hp:2 * Hp]
    o_g = ifo[:, 2 * Hp:3 * Hp]
    c_tilda = jnp.tanh(pre[:, 3 * Hp:])
    c_next = f_g * c + i_g * c_tilda
    h_next = o_g * jnp.tanh(c_next)
    return h_next, c_next


# ---------------------------------------------------------------------------
# Kernel 1: single LSTM cell step (the module's forward), all VMEM-resident.
# ---------------------------------------------------------------------------
def _lstm_cell_step_kernel(x_ref, h_ref, c_ref, w_ref, u_ref, b_ref,
                           hn_ref, cn_ref):
    Hp = c_ref.shape[-1]
    pre = (jnp.dot(x_ref[...], w_ref[...], preferred_element_type=jnp.float32)
           + jnp.dot(h_ref[...].astype(u_ref.dtype), u_ref[...],
                     preferred_element_type=jnp.float32)
           + b_ref[...])
    h_next, c_next = _gate_math(pre, c_ref[...], Hp)
    hn_ref[...] = h_next.astype(hn_ref.dtype)
    cn_ref[...] = c_next.astype(cn_ref.dtype)


def my_lstm_cell(x, h, c, params):
    """One myLSTMCell.forward step."""
    w_cat, u_cat, b_cat, H = params
    Hp = u_cat.shape[0]
    B = x.shape[0]
    Bp = _round_up(B, 8)

    xp = jnp.pad(x, ((0, Bp - B), (0, 0))).astype(w_cat.dtype)
    hp = jnp.pad(h, ((0, Bp - B), (0, Hp - H))).astype(jnp.float32)
    cp = jnp.pad(c, ((0, Bp - B), (0, Hp - H))).astype(jnp.float32)

    block_bytes = [_nbytes(a.shape, a.dtype)
                   for a in (xp, hp, cp, w_cat, u_cat, b_cat)]
    block_bytes += [_nbytes((Bp, Hp), jnp.float32)] * 2      # two outputs

    vmem = pl.BlockSpec(memory_space=pltpu.MemorySpace.VMEM)
    h_next, c_next = pl.pallas_call(
        _lstm_cell_step_kernel,
        out_shape=(jax.ShapeDtypeStruct((Bp, Hp), jnp.float32),
                   jax.ShapeDtypeStruct((Bp, Hp), jnp.float32)),
        in_specs=[vmem] * 6,
        out_specs=(vmem, vmem),
        input_output_aliases={1: 0, 2: 1},        # h -> h_next, c -> c_next
        compiler_params=pltpu.CompilerParams(
            vmem_limit_bytes=_vmem_limit(block_bytes)),
    )(xp, hp, cp, w_cat, u_cat, b_cat)
    return h_next[:B, :H], c_next[:B, :H]


# ---------------------------------------------------------------------------
# Kernel 2: hoisted input projection  pre_x = x @ W_cat + b_cat  (one big matmul)
# ---------------------------------------------------------------------------
def _xproj_kernel(x_ref, w_ref, b_ref, o_ref):
    o_ref[...] = (jnp.dot(x_ref[...], w_ref[...],
                          preferred_element_type=jnp.float32)
                  + b_ref[...]).astype(o_ref.dtype)


def _project_inputs(xs_p, w_cat, b_cat, *, tm=256):
    """xs_p: (T, Bp, D) in the MXU dtype -> (T, Bp, 4Hp) f32 pre-activations."""
    T, Bp, D = xs_p.shape
    G = w_cat.shape[1]
    M = T * Bp                                       # multiple of 8 (Bp is)
    x2 = xs_p.reshape(M, D)
    tm = min(tm, M)
    Mp = _round_up(M, tm)
    if Mp != M:
        x2 = jnp.pad(x2, ((0, Mp - M), (0, 0)))

    block_bytes = [_nbytes((tm, D), x2.dtype),
                   _nbytes(w_cat.shape, w_cat.dtype),
                   _nbytes(b_cat.shape, b_cat.dtype),
                   _nbytes((tm, G), jnp.float32)]
    out = pl.pallas_call(
        _xproj_kernel,
        grid=(Mp // tm,),
        out_shape=jax.ShapeDtypeStruct((Mp, G), jnp.float32),
        in_specs=[
            pl.BlockSpec((tm, D), lambda i: (i, 0)),     # x rows, streamed
            pl.BlockSpec((D, G), lambda i: (0, 0)),      # W_cat, resident
            pl.BlockSpec((1, G), lambda i: (0, 0)),      # bias, resident
        ],
        out_specs=pl.BlockSpec((tm, G), lambda i: (i, 0)),
        compiler_params=pltpu.CompilerParams(
            dimension_semantics=("parallel",),
            vmem_limit_bytes=_vmem_limit(block_bytes)),
    )(x2, w_cat, b_cat)
    return out[:M].reshape(T, Bp, G)


# ---------------------------------------------------------------------------
# Kernel 3: chunked recurrence.  Tc timesteps per grid step; U_cat resident;
# h/c carried in VMEM scratch (h in the MXU input dtype).
# ---------------------------------------------------------------------------
def _make_seq_kernel(Tc, T_total, Hp):
    has_tail = (T_total % Tc) != 0

    def kernel(px_ref, h0_ref, c0_ref, u_ref, hseq_ref, hT_ref, cT_ref,
               h_sc, c_sc):
        chunk = pl.program_id(0)

        @pl.when(chunk == 0)
        def _():
            h_sc[...] = h0_ref[...].astype(h_sc.dtype)
            c_sc[...] = c0_ref[...]

        u = u_ref[...]                               # (Hp, 4Hp), resident

        def step(s, carry):
            pre = px_ref[s] + jnp.dot(h_sc[...], u,
                                      preferred_element_type=jnp.float32)
            h_next, c_next = _gate_math(pre, c_sc[...], Hp)

            def commit():
                hseq_ref[s] = h_next.astype(hseq_ref.dtype)
                h_sc[...] = h_next.astype(h_sc.dtype)
                c_sc[...] = c_next

            if has_tail:
                pl.when(chunk * Tc + s < T_total)(commit)
            else:
                commit()
            return carry

        jax.lax.fori_loop(0, Tc, step, 0, unroll=True)

        @pl.when(chunk == pl.num_programs(0) - 1)
        def _():
            hT_ref[...] = h_sc[...].astype(hT_ref.dtype)
            cT_ref[...] = c_sc[...].astype(cT_ref.dtype)

    return kernel


def my_lstm_sequence(xs, h0, c0, params, *, time_chunk=8,
                     hseq_dtype=jnp.float32):
    """T repeated cell steps.  xs: (T, B, D).
    Returns (h_seq (T,B,H), h_T (B,H), c_T (B,H))."""
    w_cat, u_cat, b_cat, H = params
    Hp = u_cat.shape[0]
    G = u_cat.shape[1]
    T, B, _ = xs.shape
    Bp = _round_up(B, 8)

    xs_p = jnp.pad(xs, ((0, 0), (0, Bp - B), (0, 0))).astype(w_cat.dtype)
    h0_p = jnp.pad(h0, ((0, Bp - B), (0, Hp - H))).astype(jnp.float32)
    c0_p = jnp.pad(c0, ((0, Bp - B), (0, Hp - H))).astype(jnp.float32)

    # 1) hoisted input projection (+ bias): one big lane-dense matmul.
    px = _project_inputs(xs_p, w_cat, b_cat)              # (T, Bp, G) f32

    # 2) chunked recurrence.
    Tc = max(1, min(time_chunk, T))
    nT = -(-T // Tc)
    Tp = nT * Tc
    if Tp != T:
        px = jnp.pad(px, ((0, Tp - T), (0, 0), (0, 0)))

    block_bytes = [
        _nbytes((Tc, Bp, G), jnp.float32),        # pre_x block (streamed)
        _nbytes((Bp, Hp), jnp.float32) * 2,       # h0, c0
        _nbytes((Hp, G), u_cat.dtype),            # U_cat (resident)
        _nbytes((Tc, Bp, Hp), hseq_dtype),        # hseq block (streamed)
        _nbytes((Bp, Hp), jnp.float32) * 2,       # hT, cT
    ]
    scratch_bytes = (_nbytes((Bp, Hp), u_cat.dtype)
                     + _nbytes((Bp, Hp), jnp.float32))

    kernel = _make_seq_kernel(Tc, T, Hp)
    hseq, hT, cT = pl.pallas_call(
        kernel,
        grid=(nT,),
        out_shape=(
            jax.ShapeDtypeStruct((Tp, Bp, Hp), hseq_dtype),
            jax.ShapeDtypeStruct((Bp, Hp), jnp.float32),
            jax.ShapeDtypeStruct((Bp, Hp), jnp.float32),
        ),
        in_specs=[
            pl.BlockSpec((Tc, Bp, G), lambda t: (t, 0, 0)),   # pre_x chunk
            pl.BlockSpec((Bp, Hp), lambda t: (0, 0)),         # h0 (resident)
            pl.BlockSpec((Bp, Hp), lambda t: (0, 0)),         # c0 (resident)
            pl.BlockSpec((Hp, G), lambda t: (0, 0)),          # U_cat (resident)
        ],
        out_specs=(
            pl.BlockSpec((Tc, Bp, Hp), lambda t: (t, 0, 0)),  # h_t chunk
            pl.BlockSpec((Bp, Hp), lambda t: (0, 0)),         # final h
            pl.BlockSpec((Bp, Hp), lambda t: (0, 0)),         # final c
        ),
        scratch_shapes=[
            pltpu.VMEM((Bp, Hp), u_cat.dtype),    # h carry (MXU input dtype)
            pltpu.VMEM((Bp, Hp), jnp.float32),    # c carry
        ],
        compiler_params=pltpu.CompilerParams(
            dimension_semantics=("arbitrary",),   # sequential recurrence
            vmem_limit_bytes=_vmem_limit(block_bytes, scratch_bytes)),
    )(px, h0_p, c0_p, u_cat)

    return hseq[:T, :B, :H], hT[:B, :H], cT[:B, :H]


# ---------------------------------------------------------------------------
# Pure-JAX reference mirroring the PyTorch forward exactly.
# ---------------------------------------------------------------------------
def reference_lstm_cell(x, h, c, Ws, Us, bs):
    W1, W2, W3, W4 = Ws
    U1, U2, U3, U4 = Us
    bias_i, bias_f, bias_o, bias_c = bs
    i = jax.nn.sigmoid(x @ W1 + h @ U1 + bias_i)
    f = jax.nn.sigmoid(x @ W2 + h @ U2 + bias_f)
    o = jax.nn.sigmoid(x @ W3 + h @ U3 + bias_o)
    c_tilda = jnp.tanh(x @ W4 + h @ U4 + bias_c)
    c_next = f * c + i * c_tilda
    h_next = o * jnp.tanh(c_next)
    return h_next, c_next


if __name__ == "__main__":
    B, D, H, T = 2, 16, 32, 8

    key = jax.random.PRNGKey(0)
    ks = jax.random.split(key, 12)

    # Parameters matching __init__: Wi, Ui ~ 0.1*randn, biases = ones.
    Ws = tuple(0.1 * jax.random.normal(ks[g], (D, H), jnp.float32) for g in range(4))
    Us = tuple(0.1 * jax.random.normal(ks[4 + g], (H, H), jnp.float32) for g in range(4))
    bs = tuple(jnp.ones((1, H), jnp.float32) for _ in range(4))   # bias_i, f, o, c

    x = jax.random.normal(ks[8], (B, D), jnp.float32)
    h0 = jax.random.normal(ks[9], (B, H), jnp.float32)
    c0 = jax.random.normal(ks[10], (B, H), jnp.float32)
    xs = jax.random.normal(ks[11], (T, B, D), jnp.float32)

    params_f32 = pack_lstm_params(*Ws, *Us, *bs, compute_dtype=jnp.float32)
    params_bf16 = pack_lstm_params(*Ws, *Us, *bs)          # bf16 default path

    # --- single step, f32 (exact match to the module forward) ---------------
    h1, c1 = my_lstm_cell(x, h0, c0, params_f32)
    jax.block_until_ready((h1, c1))
    h_r1, c_r1 = reference_lstm_cell(x, h0, c0, Ws, Us, bs)
    assert jnp.allclose(h1, h_r1, atol=1e-5, rtol=1e-5), "f32 single-step h mismatch"
    assert jnp.allclose(c1, c_r1, atol=1e-5, rtol=1e-5), "f32 single-step c mismatch"

    # --- single step, bf16 MXU inputs / f32 accumulation ---------------------
    h1b, c1b = my_lstm_cell(x, h0, c0, params_bf16)
    jax.block_until_ready((h1b, c1b))
    assert jnp.allclose(h1b, h_r1, atol=5e-2, rtol=5e-2), "bf16 single-step h mismatch"
    assert jnp.allclose(c1b, c_r1, atol=5e-2, rtol=5e-2), "bf16 single-step c mismatch"

    # --- reference sequence ---------------------------------------------------
    h_ref, c_ref = h0, c0
    hseq_ref = []
    for t in range(T):
        h_ref, c_ref = reference_lstm_cell(xs[t], h_ref, c_ref, Ws, Us, bs)
        hseq_ref.append(h_ref)
    hseq_ref = jnp.stack(hseq_ref)

    # --- sequence, f32, no tail (Tc divides T) --------------------------------
    hseq, hT, cT = my_lstm_sequence(xs, h0, c0, params_f32, time_chunk=8)
    jax.block_until_ready((hseq, hT, cT))
    assert jnp.allclose(hseq, hseq_ref, atol=1e-4, rtol=1e-4), "f32 sequence h mismatch"
    assert jnp.allclose(hT, h_ref, atol=1e-4, rtol=1e-4), "f32 final h mismatch"
    assert jnp.allclose(cT, c_ref, atol=1e-4, rtol=1e-4), "f32 final c mismatch"

    # --- sequence, f32, with tail masking (Tc=3 does not divide T=8) ----------
    hseq_t, hT_t, cT_t = my_lstm_sequence(xs, h0, c0, params_f32, time_chunk=3)
    jax.block_until_ready((hseq_t, hT_t, cT_t))
    assert jnp.allclose(hseq_t, hseq_ref, atol=1e-4, rtol=1e-4), "tail sequence h mismatch"
    assert jnp.allclose(hT_t, h_ref, atol=1e-4, rtol=1e-4), "tail final h mismatch"
    assert jnp.allclose(cT_t, c_ref, atol=1e-4, rtol=1e-4), "tail final c mismatch"

    # --- sequence, bf16 default path (drift sanity check over T steps) --------
    hseq_b, hT_b, cT_b = my_lstm_sequence(xs, h0, c0, params_bf16, time_chunk=8)
    jax.block_until_ready((hseq_b, hT_b, cT_b))
    assert jnp.allclose(hseq_b, hseq_ref, atol=2e-1, rtol=5e-2), "bf16 sequence h drift"
    assert jnp.allclose(cT_b, c_ref, atol=2e-1, rtol=5e-2), "bf16 final c drift"

    print("KERNEL_OK")
</pallas_src>

<mosaic_0001>
module attributes {stable_mosaic.version = 11 : i64} {
  func.func @_lstm_cell_step_kernel(%arg0: memref<8x16xf32, #tpu.memory_space<vmem>>, %arg1: memref<8x128xf32, #tpu.memory_space<vmem>>, %arg2: memref<8x128xf32, #tpu.memory_space<vmem>>, %arg3: memref<16x512xf32, #tpu.memory_space<vmem>>, %arg4: memref<128x512xf32, #tpu.memory_space<vmem>>, %arg5: memref<1x512xf32, #tpu.memory_space<vmem>>, %arg6: memref<8x128xf32, #tpu.memory_space<vmem>>, %arg7: memref<8x128xf32, #tpu.memory_space<vmem>>) attributes {dimension_semantics = [], scalar_prefetch = 0 : i64, scratch_operands = 0 : i64, tpu.core_type = #tpu.core_type<tc>} {
    %c0 = arith.constant 0 : index
    %c0_0 = arith.constant 0 : index
    %0 = vector.load %arg0[%c0, %c0_0] : memref<8x16xf32, #tpu.memory_space<vmem>>, vector<8x16xf32>
    %c0_1 = arith.constant 0 : index
    %c0_2 = arith.constant 0 : index
    %1 = vector.load %arg3[%c0_1, %c0_2] : memref<16x512xf32, #tpu.memory_space<vmem>>, vector<16x512xf32>
    %cst = arith.constant dense<0.000000e+00> : vector<8x512xf32>
    %2 = tpu.matmul %0, %1, %cst {dimension_numbers = #tpu.dot_dimension_numbers<[1], [0], [0], [1], [0, 0, 1, 1], [], []>} : vector<8x16xf32>, vector<16x512xf32>, vector<8x512xf32> -> vector<8x512xf32>
    %c0_3 = arith.constant 0 : index
    %c0_4 = arith.constant 0 : index
    %3 = vector.load %arg1[%c0_3, %c0_4] : memref<8x128xf32, #tpu.memory_space<vmem>>, vector<8x128xf32>
    %c0_5 = arith.constant 0 : index
    %c0_6 = arith.constant 0 : index
    %4 = vector.load %arg4[%c0_5, %c0_6] : memref<128x512xf32, #tpu.memory_space<vmem>>, vector<128x512xf32>
    %cst_7 = arith.constant dense<0.000000e+00> : vector<8x512xf32>
    %5 = tpu.matmul %3, %4, %cst_7 {dimension_numbers = #tpu.dot_dimension_numbers<[1], [0], [0], [1], [0, 0, 1, 1], [], []>} : vector<8x128xf32>, vector<128x512xf32>, vector<8x512xf32> -> vector<8x512xf32>
    %6 = arith.addf %2, %5 : vector<8x512xf32>
    %c0_8 = arith.constant 0 : index
    %c0_9 = arith.constant 0 : index
    %7 = vector.load %arg5[%c0_8, %c0_9] : memref<1x512xf32, #tpu.memory_space<vmem>>, vector<1x512xf32>
    %8 = vector.broadcast %7 : vector<1x512xf32> to vector<8x512xf32>
    %9 = arith.addf %6, %8 : vector<8x512xf32>
    %c0_10 = arith.constant 0 : index
    %c0_11 = arith.constant 0 : index
    %10 = vector.load %arg2[%c0_10, %c0_11] : memref<8x128xf32, #tpu.memory_space<vmem>>, vector<8x128xf32>
    %11 = vector.extract_strided_slice %9 {offsets = [0, 0], sizes = [8, 384], strides = [1, 1]} : vector<8x512xf32> to vector<8x384xf32>
    %12 = arith.negf %11 : vector<8x384xf32>
    %13 = math.exp %12 : vector<8x384xf32>
    %cst_12 = arith.constant 1.000000e+00 : f32
    %14 = vector.broadcast %cst_12 : f32 to vector<8x384xf32>
    %15 = arith.addf %14, %13 : vector<8x384xf32>
    %16 = arith.divf %14, %15 : vector<8x384xf32>
    %17 = vector.extract_strided_slice %16 {offsets = [0, 0], sizes = [8, 128], strides = [1, 1]} : vector<8x384xf32> to vector<8x128xf32>
    %18 = vector.extract_strided_slice %16 {offsets = [0, 128], sizes = [8, 128], strides = [1, 1]} : vector<8x384xf32> to vector<8x128xf32>
    %19 = vector.extract_strided_slice %16 {offsets = [0, 256], sizes = [8, 128], strides = [1, 1]} : vector<8x384xf32> to vector<8x128xf32>
    %20 = vector.extract_strided_slice %9 {offsets = [0, 384], sizes = [8, 128], strides = [1, 1]} : vector<8x512xf32> to vector<8x128xf32>
    %21 = math.tanh %20 : vector<8x128xf32>
    %22 = arith.mulf %18, %10 : vector<8x128xf32>
    %23 = arith.mulf %17, %21 : vector<8x128xf32>
    %24 = arith.addf %22, %23 : vector<8x128xf32>
    %25 = math.tanh %24 : vector<8x128xf32>
    %26 = arith.mulf %19, %25 : vector<8x128xf32>
    %c0_13 = arith.constant 0 : index
    %c0_14 = arith.constant 0 : index
    %27 = vector.load %arg6[%c0_13, %c0_14] : memref<8x128xf32, #tpu.memory_space<vmem>>, vector<8x128xf32>
    tpu.vector_store %arg6[%c0_13, %c0_14], %26 {strides = array<i32>} : memref<8x128xf32, #tpu.memory_space<vmem>>, vector<8x128xf32>,
    %c0_15 = arith.constant 0 : index
    %c0_16 = arith.constant 0 : index
    %28 = vector.load %arg7[%c0_15, %c0_16] : memref<8x128xf32, #tpu.memory_space<vmem>>, vector<8x128xf32>
    tpu.vector_store %arg7[%c0_15, %c0_16], %24 {strides = array<i32>} : memref<8x128xf32, #tpu.memory_space<vmem>>, vector<8x128xf32>,
    return
  }
}

</mosaic_0001>

<llo_original>
// kernel: tpu_custom_call.1
$region0: #{tpu_custom_call.1}
  #allocation0 [shape = 'u32[]', space=smem, size = 0x4, offset = 0x4, fixed_abs, tag = 'smem constant byte address 0x4 - core index']
  #allocation1 [shape = 'u32[72,128]{1,0:T(1,128)}', space=vmem, size = 0x9000, scoped, tag = 'internal scratch']
  %s0 = inlined_call_operand.vmem [shape: f32[8,16], index: 0, kind: input, shape index: {}]
  %s1 = inlined_call_operand.hbm [shape: f32[8,128], index: 1, kind: input, shape index: {}, may-alias: {1,6}]
  %s2 = inlined_call_operand.hbm [shape: f32[8,128], index: 2, kind: input, shape index: {}, may-alias: {2,7}]
  %s3 = inlined_call_operand.hbm [shape: f32[16,512], index: 3, kind: input, shape index: {}]
  %s4 = inlined_call_operand.hbm [shape: f32[128,512], index: 4, kind: input, shape index: {}]
  %s5 = inlined_call_operand.vmem [shape: f32[1,512], index: 5, kind: input, shape index: {}]
  %s6 = inlined_call_operand.hbm [shape: f32[8,128], index: 6, kind: output, shape index: {0}, may-alias: {1,6}]
  %s7 = inlined_call_operand.hbm [shape: f32[8,128], index: 7, kind: output, shape index: {1}, may-alias: {2,7}]
  %8 = xla_tuple %s6, %s7
  %s9 = sld [smem:[#allocation0]]
  $region58: #{tpu_custom_call.1} parent=0
    _
  %s11 = ssub.s32 1, %s9
  %s12 = scalar_select 0, %s11, %s9
  $region1: #{tpu_custom_call.1} parent=0
    #allocation2 [shape = 'u8[4096]{0}', space=vmem, size = 0x1000, scoped, tag = 'input window, operand 1, single buffered']
    #allocation3 [shape = 's32[1]{0}', space=sflag, size = 0x4, scoped, tag = 'scoped memory for tpu_custom_call.1']
    #allocation4 [shape = 's32[1]{0}', space=sflag, size = 0x4, scoped, tag = 'scoped memory for tpu_custom_call.1']
    #allocation5 [shape = 'u8[4096]{0}', space=vmem, size = 0x1000, scoped, tag = 'input window, operand 2, single buffered']
    #allocation6 [shape = 's32[1]{0}', space=sflag, size = 0x4, scoped, tag = 'scoped memory for tpu_custom_call.1']
    #allocation7 [shape = 'u8[32768]{0}', space=vmem, size = 0x8000, scoped, tag = 'input window, operand 3, single buffered']
    #allocation8 [shape = 'u8[262144]{0}', space=vmem, size = 0x40000, scoped, tag = 'input window, operand 4, single buffered']
    #allocation9 [shape = 's32[1]{0}', space=sflag, size = 0x4, scoped, tag = 'scoped memory for tpu_custom_call.1']
    #allocation10 [shape = 'u8[4096]{0}', space=vmem, size = 0x1000, scoped, tag = 'output window, operand 0, single buffered']
    #allocation11 [shape = 'u8[4096]{0}', space=vmem, size = 0x1000, scoped, tag = 'output window, operand 1, single buffered']
    #allocation12 [shape = 's32[1]{0}', space=sflag, size = 0x4, scoped, tag = 'scoped memory for tpu_custom_call.1']
    %13 = vsyncpa [#allocation3], 0
    %14 = vsyncpa [#allocation6], 0
    %15 = vsyncpa [#allocation9], 0
    %16 = vsyncpa [#allocation4], 0
    %17 = vsyncpa [#allocation12], 0
    // Predicated region
    $region2: #{tpu_custom_call.1} parent=1 // pred_check
      _
    $region3: #{tpu_custom_call.1} parent=1 // pred_check_branch
      %19 = sbr.rel (0) target = $region5
    $region4: #{tpu_custom_call.1} parent=1 // pred_region
      _
    $region5: #{tpu_custom_call.1} parent=1 // pred_fallthru
      _
    // Predicated region
    $region6: #{tpu_custom_call.1} parent=1 // pred_check
      _
    $region7: #{tpu_custom_call.1} parent=1 // pred_check_branch
      %21 = sbr.rel (0) target = $region9
    $region8: #{tpu_custom_call.1} parent=1 // pred_region
      %23 = vsyncadd [#allocation3], 0
      %s25 = sshll.u32 %s1, 4
      %s26 = int_to_ptr.hbm [resolvable:$true] %s25
      %s27 = sshll.u32 [#allocation2], 4
      %s28 = int_to_ptr.vmem [resolvable:$true] %s27
      %30 = dma.hbm_to_vmem [thread:$0]  %s26, 128, %s28, [#allocation3]
    $region9: #{tpu_custom_call.1} parent=1 // pred_fallthru
      _
    // Predicated region
    $region10: #{tpu_custom_call.1} parent=1 // pred_check
      _
    $region11: #{tpu_custom_call.1} parent=1 // pred_check_branch
      %32 = sbr.rel (0) target = $region13
    $region12: #{tpu_custom_call.1} parent=1 // pred_region
      %34 = vsyncadd [#allocation6], 0
      %s36 = sshll.u32 %s2, 4
      %s37 = int_to_ptr.hbm [resolvable:$true] %s36
      %s38 = sshll.u32 [#allocation5], 4
      %s39 = int_to_ptr.vmem [resolvable:$true] %s38
      %41 = dma.hbm_to_vmem [thread:$0]  %s37, 128, %s39, [#allocation6]
    $region13: #{tpu_custom_call.1} parent=1 // pred_fallthru
      _
    // Predicated region
    $region14: #{tpu_custom_call.1} parent=1 // pred_check
      _
    $region15: #{tpu_custom_call.1} parent=1 // pred_check_branch
      %43 = sbr.rel (0) target = $region17
    $region16: #{tpu_custom_call.1} parent=1 // pred_region
      %45 = vsyncadd [#allocation6], 0
      %s46 = sshll.u32 %s3, 4
      %s47 = int_to_ptr.hbm [resolvable:$true] %s46
      %s48 = sshll.u32 [#allocation7], 4
      %s49 = int_to_ptr.vmem [resolvable:$true] %s48
      %54 = dma.hbm_to_vmem [thread:$0]  %s47, 1024, %s49, [#allocation6], 512, 512, 32
    $region17: #{tpu_custom_call.1} parent=1 // pred_fallthru
      _
    // Predicated region
    $region18: #{tpu_custom_call.1} parent=1 // pred_check
      _
    $region19: #{tpu_custom_call.1} parent=1 // pred_check_branch
      %56 = sbr.rel (0) target = $region21
    $region20: #{tpu_custom_call.1} parent=1 // pred_region
      %58 = vsyncadd [#allocation9], 0
      %s59 = sshll.u32 %s4, 4
      %s60 = int_to_ptr.hbm [resolvable:$true] %s59
      %s61 = sshll.u32 [#allocation8], 4
      %s62 = int_to_ptr.vmem [resolvable:$true] %s61
      %67 = dma.hbm_to_vmem [thread:$0]  %s60, 8192, %s62, [#allocation9], 512, 512, 32
    $region21: #{tpu_custom_call.1} parent=1 // pred_fallthru
      _
    // Predicated region
    $region22: #{tpu_custom_call.1} parent=1 // pred_check
      _
    $region23: #{tpu_custom_call.1} parent=1 // pred_check_branch
      %69 = sbr.rel (0) target = $region25
    $region24: #{tpu_custom_call.1} parent=1 // pred_region
      _
    $region25: #{tpu_custom_call.1} parent=1 // pred_fallthru
      _
    // Predicated region
    $region26: #{tpu_custom_call.1} parent=1 // pred_check
      _
    $region27: #{tpu_custom_call.1} parent=1 // pred_check_branch
      %71 = sbr.rel (0) target = $region29
    $region28: #{tpu_custom_call.1} parent=1 // pred_region
      %73 = dma.done [#allocation3], 128
    $region29: #{tpu_custom_call.1} parent=1 // pred_fallthru
      _
    // Predicated region
    $region30: #{tpu_custom_call.1} parent=1 // pred_check
      _
    $region31: #{tpu_custom_call.1} parent=1 // pred_check_branch
      %75 = sbr.rel (0) target = $region33
    $region32: #{tpu_custom_call.1} parent=1 // pred_region
      %77 = dma.done [#allocation6], 128
    $region33: #{tpu_custom_call.1} parent=1 // pred_fallthru
      _
    // Predicated region
    $region34: #{tpu_custom_call.1} parent=1 // pred_check
      _
    $region35: #{tpu_custom_call.1} parent=1 // pred_check_branch
      %79 = sbr.rel (0) target = $region37
    $region36: #{tpu_custom_call.1} parent=1 // pred_region
      %81 = dma.done [#allocation6], 1024
    $region37: #{tpu_custom_call.1} parent=1 // pred_fallthru
      _
    // Predicated region
    $region38: #{tpu_custom_call.1} parent=1 // pred_check
      _
    $region39: #{tpu_custom_call.1} parent=1 // pred_check_branch
      %83 = sbr.rel (0) target = $region41
    $region40: #{tpu_custom_call.1} parent=1 // pred_region
      %85 = dma.done [#allocation9], 8192
    $region41: #{tpu_custom_call.1} parent=1 // pred_fallthru
      _
    %v86 = vld [vmem:[%s0] sm:$0xff]
    %v87 = vld [vmem:[#allocation7] sm:$0xff]
    %v88 = vld [vmem:[#allocation7 + $0x8] sm:$0xff]
    %v89 = vld [vmem:[#allocation7 + $0x10] sm:$0xff]
    %v90 = vld [vmem:[#allocation7 + $0x18] sm:$0xff]
    %v91 = vld [vmem:[#allocation7 + $0x20] sm:$0xff]
    %v92 = vld [vmem:[#allocation7 + $0x28] sm:$0xff]
    %v93 = vld [vmem:[#allocation7 + $0x30] sm:$0xff]
    %v94 = vld [vmem:[#allocation7 + $0x38] sm:$0xff]
    %v95 = vld [vmem:[#allocation2] sm:$0xff]
    %v96 = vld [vmem:[#allocation8] sm:$0xff]
    %v97 = vld [vmem:[#allocation8 + $0x8] sm:$0xff]
    %v98 = vld [vmem:[#allocation8 + $0x10] sm:$0xff]
    %v99 = vld [vmem:[#allocation8 + $0x18] sm:$0xff]
    %v100 = vld [vmem:[#allocation8 + $0x20] sm:$0xff]
    %v101 = vld [vmem:[#allocation8 + $0x28] sm:$0xff]
    %v102 = vld [vmem:[#allocation8 + $0x30] sm:$0xff]
    %v103 = vld [vmem:[#allocation8 + $0x38] sm:$0xff]
    %v104 = vld [vmem:[#allocation8 + $0x40] sm:$0xff]
    %v105 = vld [vmem:[#allocation8 + $0x48] sm:$0xff]
    %v106 = vld [vmem:[#allocation8 + $0x50] sm:$0xff]
    %v107 = vld [vmem:[#allocation8 + $0x58] sm:$0xff]
    %v108 = vld [vmem:[#allocation8 + $0x60] sm:$0xff]
    %v109 = vld [vmem:[#allocation8 + $0x68] sm:$0xff]
    %v110 = vld [vmem:[#allocation8 + $0x70] sm:$0xff]
    %v111 = vld [vmem:[#allocation8 + $0x78] sm:$0xff]
    %v112 = vld [vmem:[#allocation8 + $0x80] sm:$0xff]
    %v113 = vld [vmem:[#allocation8 + $0x88] sm:$0xff]
    %v114 = vld [vmem:[#allocation8 + $0x90] sm:$0xff]
    %v115 = vld [vmem:[#allocation8 + $0x98] sm:$0xff]
    %v116 = vld [vmem:[#allocation8 + $0xa0] sm:$0xff]
    %v117 = vld [vmem:[#allocation8 + $0xa8] sm:$0xff]
    %v118 = vld [vmem:[#allocation8 + $0xb0] sm:$0xff]
    %v119 = vld [vmem:[#allocation8 + $0xb8] sm:$0xff]
    %v120 = vld [vmem:[#allocation8 + $0xc0] sm:$0xff]
    %v121 = vld [vmem:[#allocation8 + $0xc8] sm:$0xff]
    %v122 = vld [vmem:[#allocation8 + $0xd0] sm:$0xff]
    %v123 = vld [vmem:[#allocation8 + $0xd8] sm:$0xff]
    %v124 = vld [vmem:[#allocation8 + $0xe0] sm:$0xff]
    %v125 = vld [vmem:[#allocation8 + $0xe8] sm:$0xff]
    %v126 = vld [vmem:[#allocation8 + $0xf0] sm:$0xff]
    %v127 = vld [vmem:[#allocation8 + $0xf8] sm:$0xff]
    %v128 = vld [vmem:[#allocation8 + $0x100] sm:$0xff]
    %v129 = vld [vmem:[#allocation8 + $0x108] sm:$0xff]
    %v130 = vld [vmem:[#allocation8 + $0x110] sm:$0xff]
    %v131 = vld [vmem:[#allocation8 + $0x118] sm:$0xff]
    %v132 = vld [vmem:[#allocation8 + $0x120] sm:$0xff]
    %v133 = vld [vmem:[#allocation8 + $0x128] sm:$0xff]
    %v134 = vld [vmem:[#allocation8 + $0x130] sm:$0xff]
    %v135 = vld [vmem:[#allocation8 + $0x138] sm:$0xff]
    %v136 = vld [vmem:[#allocation8 + $0x140] sm:$0xff]
    %v137 = vld [vmem:[#allocation8 + $0x148] sm:$0xff]
    %v138 = vld [vmem:[#allocation8 + $0x150] sm:$0xff]
    %v139 = vld [vmem:[#allocation8 + $0x158] sm:$0xff]
    %v140 = vld [vmem:[#allocation8 + $0x160] sm:$0xff]
    %v141 = vld [vmem:[#allocation8 + $0x168] sm:$0xff]
    %v142 = vld [vmem:[#allocation8 + $0x170] sm:$0xff]
    %v143 = vld [vmem:[#allocation8 + $0x178] sm:$0xff]
    %v144 = vld [vmem:[#allocation8 + $0x180] sm:$0xff]
    %v145 = vld [vmem:[#allocation8 + $0x188] sm:$0xff]
    %v146 = vld [vmem:[#allocation8 + $0x190] sm:$0xff]
    %v147 = vld [vmem:[#allocation8 + $0x198] sm:$0xff]
    %v148 = vld [vmem:[#allocation8 + $0x1a0] sm:$0xff]
    %v149 = vld [vmem:[#allocation8 + $0x1a8] sm:$0xff]
    %v150 = vld [vmem:[#allocation8 + $0x1b0] sm:$0xff]
    %v151 = vld [vmem:[#allocation8 + $0x1b8] sm:$0xff]
    %v152 = vld [vmem:[#allocation8 + $0x1c0] sm:$0xff]
    %v153 = vld [vmem:[#allocation8 + $0x1c8] sm:$0xff]
    %v154 = vld [vmem:[#allocation8 + $0x1d0] sm:$0xff]
    %v155 = vld [vmem:[#allocation8 + $0x1d8] sm:$0xff]
    %v156 = vld [vmem:[#allocation8 + $0x1e0] sm:$0xff]
    %v157 = vld [vmem:[#allocation8 + $0x1e8] sm:$0xff]
    %v158 = vld [vmem:[#allocation8 + $0x1f0] sm:$0xff]
    %v159 = vld [vmem:[#allocation8 + $0x1f8] sm:$0xff]
    %160 = vmatpush.msra.mxu0 %v156
    %161 = vmatpush.msra.mxu0 %v152
    %162 = vmatpush.msra.mxu0 %v148
    %163 = vmatpush.msra.mxu0 %v144
    %164 = vmatpush.msra.mxu0 %v140
    %165 = vmatpush.msra.mxu0 %v136
    %166 = vmatpush.msra.mxu0 %v132
    %167 = vmatpush.msra.mxu0 %v128
    %168 = vmatpush.msra.mxu0 %v124
    %169 = vmatpush.msra.mxu0 %v120
    %170 = vmatpush.msra.mxu0 %v116
    %171 = vmatpush.msra.mxu0 %v112
    %172 = vmatpush.msra.mxu0 %v108
    %173 = vmatpush.msra.mxu0 %v104
    %174 = vmatpush.msra.mxu0 %v100
    %175 = vmatpush.msra.mxu0 %v96
    %176 = vmatmul.f32.gmra.mxu0 %v95
    %v177 = vpop.f32.mrf.mxu0
    %v178 = vadd.f32 0.0, %v177
    %179 = vdwg.mxu0
    %180 = vmatpush.msra.mxu0 %v157
    %181 = vmatpush.msra.mxu0 %v153
    %182 = vmatpush.msra.mxu0 %v149
    %183 = vmatpush.msra.mxu0 %v145
    %184 = vmatpush.msra.mxu0 %v141
    %185 = vmatpush.msra.mxu0 %v137
    %186 = vmatpush.msra.mxu0 %v133
    %187 = vmatpush.msra.mxu0 %v129
    %188 = vmatpush.msra.mxu0 %v125
    %189 = vmatpush.msra.mxu0 %v121
    %190 = vmatpush.msra.mxu0 %v117
    %191 = vmatpush.msra.mxu0 %v113
    %192 = vmatpush.msra.mxu0 %v109
    %193 = vmatpush.msra.mxu0 %v105
    %194 = vmatpush.msra.mxu0 %v101
    %195 = vmatpush.msra.mxu0 %v97
    %196 = vmatmul.f32.gmra.mxu0 %v95
    %v197 = vpop.f32.mrf.mxu0
    %v198 = vadd.f32 0.0, %v197
    %199 = vdwg.mxu0
    %200 = vmatpush.msra.mxu0 %v158
    %201 = vmatpush.msra.mxu0 %v154
    %202 = vmatpush.msra.mxu0 %v150
    %203 = vmatpush.msra.mxu0 %v146
    %204 = vmatpush.msra.mxu0 %v142
    %205 = vmatpush.msra.mxu0 %v138
    %206 = vmatpush.msra.mxu0 %v134
    %207 = vmatpush.msra.mxu0 %v130
    %208 = vmatpush.msra.mxu0 %v126
    %209 = vmatpush.msra.mxu0 %v122
    %210 = vmatpush.msra.mxu0 %v118
    %211 = vmatpush.msra.mxu0 %v114
    %212 = vmatpush.msra.mxu0 %v110
    %213 = vmatpush.msra.mxu0 %v106
    %214 = vmatpush.msra.mxu0 %v102
    %215 = vmatpush.msra.mxu0 %v98
    %216 = vmatmul.f32.gmra.mxu0 %v95
    %v217 = vpop.f32.mrf.mxu0
    %v218 = vadd.f32 0.0, %v217
    %219 = vdwg.mxu0
    %220 = vmatpush.msra.mxu0 %v159
    %221 = vmatpush.msra.mxu0 %v155
    %222 = vmatpush.msra.mxu0 %v151
    %223 = vmatpush.msra.mxu0 %v147
    %224 = vmatpush.msra.mxu0 %v143
    %225 = vmatpush.msra.mxu0 %v139
    %226 = vmatpush.msra.mxu0 %v135
    %227 = vmatpush.msra.mxu0 %v131
    %228 = vmatpush.msra.mxu0 %v127
    %229 = vmatpush.msra.mxu0 %v123
    %230 = vmatpush.msra.mxu0 %v119
    %231 = vmatpush.msra.mxu0 %v115
    %232 = vmatpush.msra.mxu0 %v111
    %233 = vmatpush.msra.mxu0 %v107
    %234 = vmatpush.msra.mxu0 %v103
    %235 = vmatpush.msra.mxu0 %v99
    %236 = vmatmul.f32.gmra.mxu0 %v95
    %v237 = vpop.f32.mrf.mxu0
    %v238 = vadd.f32 0.0, %v237
    %239 = vdwg.mxu0
    %vm240 = vcmask 130048
    %v242 = vsel %vm240, %v86, 0
    %244 = vmatpush.msra.mxu0 0.0
    %245 = vmatpush.msra.mxu0 0.0
    %246 = vmatpush.msra.mxu0 0.0
    %247 = vmatpush.msra.mxu0 0.0
    %248 = vmatpush.msra.mxu0 0.0
    %249 = vmatpush.msra.mxu0 0.0
    %250 = vmatpush.msra.mxu0 0.0
    %251 = vmatpush.msra.mxu0 0.0
    %252 = vmatpush.msra.mxu0 0.0
    %253 = vmatpush.msra.mxu0 0.0
    %254 = vmatpush.msra.mxu0 0.0
    %255 = vmatpush.msra.mxu0 0.0
    %256 = vmatpush.msra.mxu0 0.0
    %257 = vmatpush.msra.mxu0 0.0
    %258 = vmatpush.msra.mxu0 %v91
    %259 = vmatpush.msra.mxu0 %v87
    %260 = vmatmul.f32.gmra.mxu0 %v242
    %v261 = vpop.f32.mrf.mxu0
    %v262 = vadd.f32 %v178, %v261
    %263 = vdwg.mxu0
    %264 = vmatpush.msra.mxu0 0.0
    %265 = vmatpush.msra.mxu0 0.0
    %266 = vmatpush.msra.mxu0 0.0
    %267 = vmatpush.msra.mxu0 0.0
    %268 = vmatpush.msra.mxu0 0.0
    %269 = vmatpush.msra.mxu0 0.0
    %270 = vmatpush.msra.mxu0 0.0
    %271 = vmatpush.msra.mxu0 0.0
    %272 = vmatpush.msra.mxu0 0.0
    %273 = vmatpush.msra.mxu0 0.0
    %274 = vmatpush.msra.mxu0 0.0
    %275 = vmatpush.msra.mxu0 0.0
    %276 = vmatpush.msra.mxu0 0.0
    %277 = vmatpush.msra.mxu0 0.0
    %278 = vmatpush.msra.mxu0 %v92
    %279 = vmatpush.msra.mxu0 %v88
    %280 = vmatmul.f32.gmra.mxu0 %v242
    %v281 = vpop.f32.mrf.mxu0
    %v282 = vadd.f32 %v198, %v281
    %283 = vdwg.mxu0
    %284 = vmatpush.msra.mxu0 0.0
    %285 = vmatpush.msra.mxu0 0.0
    %286 = vmatpush.msra.mxu0 0.0
    %287 = vmatpush.msra.mxu0 0.0
    %288 = vmatpush.msra.mxu0 0.0
    %289 = vmatpush.msra.mxu0 0.0
    %290 = vmatpush.msra.mxu0 0.0
    %291 = vmatpush.msra.mxu0 0.0
    %292 = vmatpush.msra.mxu0 0.0
    %293 = vmatpush.msra.mxu0 0.0
    %294 = vmatpush.msra.mxu0 0.0
    %295 = vmatpush.msra.mxu0 0.0
    %296 = vmatpush.msra.mxu0 0.0
    %297 = vmatpush.msra.mxu0 0.0
    %298 = vmatpush.msra.mxu0 %v93
    %299 = vmatpush.msra.mxu0 %v89
    %300 = vmatmul.f32.gmra.mxu0 %v242
    %v301 = vpop.f32.mrf.mxu0
    %v302 = vadd.f32 %v218, %v301
    %303 = vdwg.mxu0
    %304 = vmatpush.msra.mxu0 0.0
    %305 = vmatpush.msra.mxu0 0.0
    %306 = vmatpush.msra.mxu0 0.0
    %307 = vmatpush.msra.mxu0 0.0
    %308 = vmatpush.msra.mxu0 0.0
    %309 = vmatpush.msra.mxu0 0.0
    %310 = vmatpush.msra.mxu0 0.0
    %311 = vmatpush.msra.mxu0 0.0
    %312 = vmatpush.msra.mxu0 0.0
    %313 = vmatpush.msra.mxu0 0.0
    %314 = vmatpush.msra.mxu0 0.0
    %315 = vmatpush.msra.mxu0 0.0
    %316 = vmatpush.msra.mxu0 0.0
    %317 = vmatpush.msra.mxu0 0.0
    %318 = vmatpush.msra.mxu0 %v94
    %319 = vmatpush.msra.mxu0 %v90
    %320 = vmatmul.f32.gmra.mxu0 %v242
    %v321 = vpop.f32.mrf.mxu0
    %v322 = vadd.f32 %v238, %v321
    %323 = vdwg.mxu0
    %v324 = vld [vmem:[%s5] sm:$0xf]
    %v326 = vperm.slane %v324, 0
    %v327 = vperm.slane %v324, 1
    %v328 = vperm.slane %v324, 2
    %v329 = vperm.slane %v324, 3
    %v334 = vadd.f32 %v262, %v326
    %v335 = vadd.f32 %v282, %v327
    %v336 = vadd.f32 %v302, %v328
    %v337 = vadd.f32 %v322, %v329
    %v338 = vld [vmem:[#allocation5] sm:$0xff]
    %v339 = vxor.u32 %v334, 2147483648
    %v340 = vxor.u32 %v335, 2147483648
    %v341 = vxor.u32 %v336, 2147483648
    %v342 = vmul.f32 %v339, 1.442695
    %v343 = vpow.pop %v342
    %v344 = vmul.f32 %v340, 1.442695
    %v345 = vpow.pop %v344
    %v346 = vmul.f32 %v341, 1.442695
    %v347 = vpow.pop %v346
    %v348 = vadd.f32 %v343, 1.0
    %v349 = vadd.f32 %v345, 1.0
    %v350 = vadd.f32 %v347, 1.0
    %v351 = vrcp.pop %v348
    %v352 = vmul.f32 %v348, %v351
    %v353 = vsub.f32 1.0, %v352
    %v354 = vmul.f32 %v351, %v353
    %v355 = vadd.f32 %v351, %v354
    %vm356 = vweird.f32 %v348
    %vm357 = vweird.f32 %v351
    %vm358 = vmor %vm356, %vm357
    %v359 = vsel %vm358, %v351, %v355
    %v360 = vand.u32 2147483647, %v348
    %vm361 = vcmp.eq.f32.partialorder %v360, 8.507059e+37
    %v362 = vand.u32 %v348, 2147483648
    %v363 = vor.u32 1.1754944e-38, %v362
    %v364 = vsel %vm361, %v363, %v359
    %v365 = vmul.f32 1.0, %v364
    %v366 = vrcp.pop %v349
    %v367 = vmul.f32 %v349, %v366
    %v368 = vsub.f32 1.0, %v367
    %v369 = vmul.f32 %v366, %v368
    %v370 = vadd.f32 %v366, %v369
    %vm371 = vweird.f32 %v349
    %vm372 = vweird.f32 %v366
    %vm373 = vmor %vm371, %vm372
    %v374 = vsel %vm373, %v366, %v370
    %v375 = vand.u32 2147483647, %v349
    %vm376 = vcmp.eq.f32.partialorder %v375, 8.507059e+37
    %v377 = vand.u32 %v349, 2147483648
    %v378 = vor.u32 1.1754944e-38, %v377
    %v379 = vsel %vm376, %v378, %v374
    %v380 = vmul.f32 1.0, %v379
    %v381 = vrcp.pop %v350
    %v382 = vmul.f32 %v350, %v381
    %v383 = vsub.f32 1.0, %v382
    %v384 = vmul.f32 %v381, %v383
    %v385 = vadd.f32 %v381, %v384
    %vm386 = vweird.f32 %v350
    %vm387 = vweird.f32 %v381
    %vm388 = vmor %vm386, %vm387
    %v389 = vsel %vm388, %v381, %v385
    %v390 = vand.u32 2147483647, %v350
    %vm391 = vcmp.eq.f32.partialorder %v390, 8.507059e+37
    %v392 = vand.u32 %v350, 2147483648
    %v393 = vor.u32 1.1754944e-38, %v392
    %v394 = vsel %vm391, %v393, %v389
    %v395 = vmul.f32 1.0, %v394
    %v396 = vtanh.pop %v337
    %v397 = vmul.f32 %v380, %v338
    %v398 = vmul.f32 %v365, %v396
    %v399 = vadd.f32 %v397, %v398
    %v400 = vtanh.pop %v399
    %v401 = vmul.f32 %v395, %v400
    %402 = vst [vmem:[#allocation10] sm:$0xff] %v401
    %403 = vst [vmem:[#allocation11] sm:$0xff] %v399
    // Predicated region
    $region42: #{tpu_custom_call.1} parent=1 // pred_check
      _
    $region43: #{tpu_custom_call.1} parent=1 // pred_check_branch
      %405 = sbr.rel (0) target = $region45
    $region44: #{tpu_custom_call.1} parent=1 // pred_region
      %407 = vsyncadd [#allocation4], 0
      %s409 = sshll.u32 [#allocation10], 4
      %s410 = int_to_ptr.vmem [resolvable:$true] %s409
      %s411 = sshll.u32 %s6, 4
      %s412 = int_to_ptr.hbm [resolvable:$true] %s411
      %414 = dma.vmem_to_hbm [thread:$0]  %s410, 128, %s412, [#allocation4]
    $region45: #{tpu_custom_call.1} parent=1 // pred_fallthru
      _
    // Predicated region
    $region46: #{tpu_custom_call.1} parent=1 // pred_check
      _
    $region47: #{tpu_custom_call.1} parent=1 // pred_check_branch
      %416 = sbr.rel (0) target = $region49
    $region48: #{tpu_custom_call.1} parent=1 // pred_region
      %418 = vsyncadd [#allocation12], 0
      %s420 = sshll.u32 [#allocation11], 4
      %s421 = int_to_ptr.vmem [resolvable:$true] %s420
      %s422 = sshll.u32 %s7, 4
      %s423 = int_to_ptr.hbm [resolvable:$true] %s422
      %425 = dma.vmem_to_hbm [thread:$0]  %s421, 128, %s423, [#allocation12]
    $region49: #{tpu_custom_call.1} parent=1 // pred_fallthru
      _
    // Predicated region
    $region50: #{tpu_custom_call.1} parent=1 // pred_check
      _
    $region51: #{tpu_custom_call.1} parent=1 // pred_check_branch
      %427 = sbr.rel (0) target = $region53
    $region52: #{tpu_custom_call.1} parent=1 // pred_region
      %429 = dma.done [#allocation4], 128
    $region53: #{tpu_custom_call.1} parent=1 // pred_fallthru
      _
    // Predicated region
    $region54: #{tpu_custom_call.1} parent=1 // pred_check
      _
    $region55: #{tpu_custom_call.1} parent=1 // pred_check_branch
      %431 = sbr.rel (0) target = $region57
    $region56: #{tpu_custom_call.1} parent=1 // pred_region
      %433 = dma.done [#allocation12], 128
    $region57: #{tpu_custom_call.1} parent=1 // pred_fallthru
      _
    %434 = vsyncpa [#allocation3], 1
    %435 = vsyncpa [#allocation6], 1
    %436 = vsyncpa [#allocation9], 1
    %437 = vsyncpa [#allocation4], 1
    %438 = vsyncpa [#allocation12], 1

</llo_original>
